<compile_context>
chip_gen: v5e
topology: v5e:2x2
jax: 0.10.0
libtpu: 0.0.40
codegen_flags: <defaults>
</compile_context>

<pallas_src>
import functools

import jax
import jax.numpy as jnp
from jax.experimental import pallas as pl
from jax.experimental.pallas import tpu as pltpu


# ---------------------------------------------------------------------------
# Kernels
# ---------------------------------------------------------------------------

def _apply_control(h, c, mask, *, normalize):
    """h: (tM, H) f32 block output; c: (1, H) f32 control; mask: (tM, 1) f32."""
    modified = h + c * mask                                    # operator = add
    if normalize:
        sumsq_pre = jnp.sum(h * h, axis=-1, keepdims=True)     # ||block(x)||^2
        sumsq_post = jnp.sum(modified * modified, axis=-1, keepdims=True)
        # modified / ||modified|| * ||h|| == modified * sqrt(pre) * rsqrt(post)
        scale = jnp.sqrt(sumsq_pre) * jax.lax.rsqrt(jnp.maximum(sumsq_post, 1e-30))
        modified = modified * scale
    return modified


def _resident_kernel(x_ref, w_ref, b_ref, c_ref, mask_ref, o_ref, *, normalize):
    # Wrapped block: Linear(H, H) on the MXU.  x is cast to bf16 in-kernel
    # (VPU work hidden under the MXU) so the wrapper adds no extra HBM pass.
    x = x_ref[...].astype(jnp.bfloat16)
    h = jnp.dot(x, w_ref[...], preferred_element_type=jnp.float32) + b_ref[...]
    o_ref[...] = _apply_control(h, c_ref[...], mask_ref[...],
                                normalize=normalize).astype(o_ref.dtype)


def _streamed_kernel(x_ref, w_ref, b_ref, c_ref, mask_ref, o_ref, acc_ref, *,
                     normalize):
    # K-streamed variant for hidden sizes whose bf16 weight does not fit VMEM.
    # program_id / num_programs are read at the TOP level only (never inside a
    # pl.when body) so the kernel also lowers cleanly under interpret mode.
    k = pl.program_id(1)
    nk = pl.num_programs(1)

    @pl.when(k == 0)
    def _():
        acc_ref[...] = jnp.zeros_like(acc_ref)

    acc_ref[...] += jnp.dot(x_ref[...].astype(jnp.bfloat16), w_ref[...],
                            preferred_element_type=jnp.float32)

    @pl.when(k == nk - 1)
    def _():
        h = acc_ref[...] + b_ref[...]
        o_ref[...] = _apply_control(h, c_ref[...], mask_ref[...],
                                    normalize=normalize).astype(o_ref.dtype)


# ---------------------------------------------------------------------------
# Wrapper
# ---------------------------------------------------------------------------

def _vmem_capacity_bytes():
    try:
        cap = int(pltpu.get_tpu_info().vmem_capacity_bytes)
        if cap > 0:
            return cap
    except Exception:
        pass
    return 64 << 20  # conservative default (v7x per-TensorCore)


_TM_CANDIDATES = (2048, 1024, 512, 256, 128, 64, 32, 16, 8)
_TK_CANDIDATES = (512, 256, 128)


def control_module_forward(x, w, bias, control, position_ids=None, normalize=False):
    """x: (B, S, H); w: (H, H); bias: (H,); control: (H,)/(1,1,H)/None;
    position_ids: (B, S) or (1, S) int, or None."""
    B, S, H = x.shape
    M = B * S
    out_dtype = x.dtype
    x_size = jnp.dtype(x.dtype).itemsize
    o_size = jnp.dtype(out_dtype).itemsize

    has_control = control is not None
    if not has_control:
        control = jnp.zeros((H,), jnp.float32)   # h + 0*mask == h  (exact identity)
        normalize = False

    # ---- small host-side prep (O(B*S) / O(H*H) only; no (B,S,H) extra pass) ----
    # TODO(synk): cache the bf16 weight cast across calls instead of per-forward.
    w_bf = jnp.asarray(w).astype(jnp.bfloat16)
    bias2d = jnp.asarray(bias, jnp.float32).reshape(1, H)
    control2d = jnp.asarray(control, jnp.float32).reshape(1, H)

    if position_ids is not None:
        pos = jnp.asarray(position_ids, jnp.int32)
        if pos.shape[0] == 1 and B > 1:
            pos = jnp.broadcast_to(pos, (B, S))
        elif pos.shape[0] != B:                      # torch: pos.repeat(B, 1)
            pos = jnp.tile(pos, (B // pos.shape[0], 1))
        # torch: (pos == 0).cumsum(1).argmax(1) == index of last zero (0 if none)
        zero_idx = jnp.argmax(jnp.cumsum((pos == 0).astype(jnp.int32), axis=1),
                              axis=1, keepdims=True)
        col = jnp.arange(S, dtype=jnp.int32)[None, :]
        mask = (col >= zero_idx).astype(jnp.float32)
    else:
        mask = jnp.ones((B, S), jnp.float32)
    mask2d = mask.reshape(M, 1)

    x2d = jnp.asarray(x).reshape(M, H)               # free reshape; original dtype

    # ---- VMEM-aware tile selection ----
    cap = _vmem_capacity_bytes()
    budget = int(0.80 * cap)
    w_bytes = H * H * 2                              # bf16 weight
    small = 4 * H * 4                                # bias + control (2 bufs each)

    def need_resident(tm):
        return (2 * tm * H * x_size + 2 * w_bytes + 2 * tm * H * o_size
                + 2 * tm * 4 + small)

    def need_streamed(tm, tk):
        return (2 * tm * tk * x_size + 2 * tk * H * 2 + 2 * tm * H * o_size
                + tm * H * 4 + 2 * tm * 4 + small)

    tm_cands = [t for t in _TM_CANDIDATES if t <= M and M % t == 0] or [M]
    resident = need_resident(tm_cands[-1]) <= budget

    if resident:
        tm = next((t for t in tm_cands if need_resident(t) <= budget), tm_cands[-1])
        need = need_resident(tm)
        grid = (M // tm,)
        kernel = functools.partial(_resident_kernel, normalize=bool(normalize))
        in_specs = [
            pl.BlockSpec((tm, H), lambda m: (m, 0)),      # x
            pl.BlockSpec((H, H), lambda m: (0, 0)),       # W resident (single DMA)
            pl.BlockSpec((1, H), lambda m: (0, 0)),       # bias
            pl.BlockSpec((1, H), lambda m: (0, 0)),       # control
            pl.BlockSpec((tm, 1), lambda m: (m, 0)),      # position mask
        ]
        out_spec = pl.BlockSpec((tm, H), lambda m: (m, 0))
        scratch = []
        semantics = ("parallel",)
    else:
        choice = None
        for t in tm_cands:                                 # maximize M tile first
            for tk in _TK_CANDIDATES:                      # then pick a K tile
                if tk <= H and H % tk == 0 and need_streamed(t, tk) <= budget:
                    choice = (t, tk)
                    break
            if choice is not None:
                break
        if choice is None:
            choice = (tm_cands[-1], 128 if H % 128 == 0 else H)
        tm, tk = choice
        need = need_streamed(tm, tk)
        grid = (M // tm, H // tk)
        kernel = functools.partial(_streamed_kernel, normalize=bool(normalize))
        in_specs = [
            pl.BlockSpec((tm, tk), lambda m, k: (m, k)),   # x
            pl.BlockSpec((tk, H), lambda m, k: (k, 0)),    # W (K-streamed)
            pl.BlockSpec((1, H), lambda m, k: (0, 0)),     # bias
            pl.BlockSpec((1, H), lambda m, k: (0, 0)),     # control
            pl.BlockSpec((tm, 1), lambda m, k: (m, 0)),    # position mask
        ]
        out_spec = pl.BlockSpec((tm, H), lambda m, k: (m, 0))
        scratch = [pltpu.VMEM((tm, H), jnp.float32)]
        semantics = ("parallel", "arbitrary")

    vmem_limit = int(min(int(0.85 * cap), max(32 << 20, (need * 3) // 2)))
    vmem_limit = max(vmem_limit, need)                     # never below the estimate

    grid_spec = pltpu.PrefetchScalarGridSpec(
        num_scalar_prefetch=0, grid=grid,
        in_specs=in_specs, out_specs=out_spec, scratch_shapes=scratch)

    out2d = pl.pallas_call(
        kernel,
        out_shape=jax.ShapeDtypeStruct((M, H), out_dtype),
        grid_spec=grid_spec,
        compiler_params=pltpu.CompilerParams(
            dimension_semantics=semantics,
            vmem_limit_bytes=vmem_limit),
    )(x2d, w_bf, bias2d, control2d, mask2d)

    return out2d.reshape(B, S, H)


# ---------------------------------------------------------------------------
# Pure-JAX reference (mirrors the kernel's bf16-fed MXU / f32-accumulate numerics)
# ---------------------------------------------------------------------------

def _reference(x, w, bias, control, position_ids, normalize):
    h = jnp.einsum('bsh,hd->bsd',
                   x.astype(jnp.bfloat16), jnp.asarray(w).astype(jnp.bfloat16),
                   preferred_element_type=jnp.float32)
    h = h + jnp.asarray(bias, jnp.float32).reshape(1, 1, -1)
    if control is None:
        return h.astype(x.dtype)
    norm_pre = jnp.linalg.norm(h, axis=-1, keepdims=True)
    if position_ids is not None:
        pos = jnp.asarray(position_ids, jnp.int32)
        if pos.shape[0] != x.shape[0]:
            pos = jnp.tile(pos, (x.shape[0] // pos.shape[0], 1))
        zero_idx = jnp.argmax(jnp.cumsum((pos == 0).astype(jnp.int32), axis=1),
                              axis=1, keepdims=True)
        col = jnp.arange(pos.shape[1])[None, :]
        mask = (col >= zero_idx).astype(jnp.float32)[..., None]
    else:
        mask = 1.0
    modified = h + jnp.asarray(control, jnp.float32).reshape(1, 1, -1) * mask
    if normalize:
        norm_post = jnp.linalg.norm(modified, axis=-1, keepdims=True)
        modified = modified / norm_post * norm_pre
    return modified.astype(x.dtype)


if __name__ == "__main__":
    key = jax.random.PRNGKey(0)
    kx, kw, kb, kc = jax.random.split(key, 4)
    B, S, H = 2, 8, 32

    x = jax.random.normal(kx, (B, S, H), jnp.float32)
    w = jax.random.normal(kw, (H, H), jnp.float32) * 0.1      # wrapped-block weight
    bias = jax.random.normal(kb, (H,), jnp.float32) * 0.1     # wrapped-block bias
    control = jax.random.normal(kc, (H,), jnp.float32)        # 1-D control vector
    # batch 0 is left-padded (zeros at positions 0..2), batch 1 starts at 0.
    position_ids = jnp.array([[0, 0, 0, 1, 2, 3, 4, 5],
                              [0, 1, 2, 3, 4, 5, 6, 7]], dtype=jnp.int32)

    # 1) full path: control + position mask + re-normalization
    out = control_module_forward(x, w, bias, control,
                                 position_ids=position_ids, normalize=True)
    out = jax.block_until_ready(out)
    ref = _reference(x, w, bias, control, position_ids, True)
    assert out.shape == (B, S, H)
    assert jnp.allclose(out, ref, atol=1e-2, rtol=1e-2), "mismatch: full path"

    # 2) control without position_ids / normalize
    out2 = jax.block_until_ready(
        control_module_forward(x, w, bias, control, position_ids=None, normalize=False))
    ref2 = _reference(x, w, bias, control, None, False)
    assert jnp.allclose(out2, ref2, atol=1e-2, rtol=1e-2), "mismatch: no-pos path"

    # 3) control is None -> output == block(x)
    out3 = jax.block_until_ready(
        control_module_forward(x, w, bias, None, position_ids=None, normalize=True))
    ref3 = _reference(x, w, bias, None, None, False)
    assert jnp.allclose(out3, ref3, atol=1e-2, rtol=1e-2), "mismatch: control=None path"

    print("KERNEL_OK")
</pallas_src>

<mosaic_0001>
module attributes {stable_mosaic.version = 11 : i64} {
  func.func @_resident_kernel(%arg0: i32, %arg1: memref<16x32xf32, #tpu.memory_space<vmem>>, %arg2: memref<32x32xbf16, #tpu.memory_space<vmem>>, %arg3: memref<1x32xf32, #tpu.memory_space<vmem>>, %arg4: memref<1x32xf32, #tpu.memory_space<vmem>>, %arg5: memref<16x1xf32, #tpu.memory_space<vmem>>, %arg6: memref<16x32xf32, #tpu.memory_space<vmem>>) attributes {dimension_semantics = [#tpu.dimension_semantics<parallel>], iteration_bounds = array<i64: 1>, scalar_prefetch = 0 : i64, scratch_operands = 0 : i64, tpu.core_type = #tpu.core_type<tc>, window_params = [{transform_indices = @transform_0, window_bounds = array<i64: 16, 32>}, {pipeline_mode = #tpu.pipeline_mode<synchronous>, transform_indices = @transform_1, window_bounds = array<i64: 32, 32>}, {pipeline_mode = #tpu.pipeline_mode<synchronous>, transform_indices = @transform_2, window_bounds = array<i64: 1, 32>}, {pipeline_mode = #tpu.pipeline_mode<synchronous>, transform_indices = @transform_3, window_bounds = array<i64: 1, 32>}, {transform_indices = @transform_4, window_bounds = array<i64: 16, 1>}, {transform_indices = @transform_5, window_bounds = array<i64: 16, 32>}]} {
    %c0 = arith.constant 0 : index
    %c0_0 = arith.constant 0 : index
    %0 = vector.load %arg1[%c0, %c0_0] : memref<16x32xf32, #tpu.memory_space<vmem>>, vector<16x32xf32>
    %1 = arith.truncf %0 : vector<16x32xf32> to vector<16x32xbf16>
    %c0_1 = arith.constant 0 : index
    %c0_2 = arith.constant 0 : index
    %2 = vector.load %arg2[%c0_1, %c0_2] : memref<32x32xbf16, #tpu.memory_space<vmem>>, vector<32x32xbf16>
    %cst = arith.constant dense<0.000000e+00> : vector<16x32xf32>
    %3 = tpu.matmul %1, %2, %cst {dimension_numbers = #tpu.dot_dimension_numbers<[1], [0], [0], [1], [0, 0, 1, 1], [], []>} : vector<16x32xbf16>, vector<32x32xbf16>, vector<16x32xf32> -> vector<16x32xf32>
    %c0_3 = arith.constant 0 : index
    %c0_4 = arith.constant 0 : index
    %4 = vector.load %arg3[%c0_3, %c0_4] : memref<1x32xf32, #tpu.memory_space<vmem>>, vector<1x32xf32>
    %5 = vector.broadcast %4 : vector<1x32xf32> to vector<16x32xf32>
    %6 = arith.addf %3, %5 : vector<16x32xf32>
    %c0_5 = arith.constant 0 : index
    %c0_6 = arith.constant 0 : index
    %7 = vector.load %arg4[%c0_5, %c0_6] : memref<1x32xf32, #tpu.memory_space<vmem>>, vector<1x32xf32>
    %c0_7 = arith.constant 0 : index
    %c0_8 = arith.constant 0 : index
    %8 = vector.load %arg5[%c0_7, %c0_8] : memref<16x1xf32, #tpu.memory_space<vmem>>, vector<16x1xf32>
    %9 = vector.broadcast %7 : vector<1x32xf32> to vector<16x32xf32>
    %10 = vector.broadcast %8 : vector<16x1xf32> to vector<16x32xf32>
    %11 = arith.mulf %9, %10 : vector<16x32xf32>
    %12 = arith.addf %6, %11 : vector<16x32xf32>
    %13 = arith.mulf %6, %6 : vector<16x32xf32>
    %cst_9 = arith.constant dense<0.000000e+00> : vector<16xf32>
    %14 = vector.multi_reduction <add>, %13, %cst_9 [1] : vector<16x32xf32> to vector<16xf32>
    %15 = vector.shape_cast %14 : vector<16xf32> to vector<16x1xf32>
    %16 = arith.mulf %12, %12 : vector<16x32xf32>
    %cst_10 = arith.constant dense<0.000000e+00> : vector<16xf32>
    %17 = vector.multi_reduction <add>, %16, %cst_10 [1] : vector<16x32xf32> to vector<16xf32>
    %18 = vector.shape_cast %17 : vector<16xf32> to vector<16x1xf32>
    %19 = math.sqrt %15 : vector<16x1xf32>
    %cst_11 = arith.constant 1.000000e-30 : f32
    %20 = vector.broadcast %cst_11 : f32 to vector<16x1xf32>
    %21 = arith.maximumf %18, %20 : vector<16x1xf32>
    %22 = math.rsqrt %21 : vector<16x1xf32>
    %23 = arith.mulf %19, %22 : vector<16x1xf32>
    %24 = vector.broadcast %23 : vector<16x1xf32> to vector<16x32xf32>
    %25 = arith.mulf %12, %24 : vector<16x32xf32>
    %c0_12 = arith.constant 0 : index
    %c0_13 = arith.constant 0 : index
    %26 = vector.load %arg6[%c0_12, %c0_13] : memref<16x32xf32, #tpu.memory_space<vmem>>, vector<16x32xf32>
    tpu.vector_store %arg6[%c0_12, %c0_13], %25 {strides = array<i32>} : memref<16x32xf32, #tpu.memory_space<vmem>>, vector<16x32xf32>,
    return
  }
  func.func @transform_0(%arg0: i32) -> (i32, i32) {
    %c0_i32 = arith.constant 0 : i32
    %c0_i32_0 = arith.constant 0 : i32
    return %arg0, %c0_i32 : i32, i32
  }
  func.func @transform_1(%arg0: i32) -> (i32, i32) {
    %c0_i32 = arith.constant 0 : i32
    %c0_i32_0 = arith.constant 0 : i32
    %c0_i32_1 = arith.constant 0 : i32
    return %c0_i32, %c0_i32_0 : i32, i32
  }
  func.func @transform_2(%arg0: i32) -> (i32, i32) {
    %c0_i32 = arith.constant 0 : i32
    %c0_i32_0 = arith.constant 0 : i32
    %c0_i32_1 = arith.constant 0 : i32
    return %c0_i32, %c0_i32_0 : i32, i32
  }
  func.func @transform_3(%arg0: i32) -> (i32, i32) {
    %c0_i32 = arith.constant 0 : i32
    %c0_i32_0 = arith.constant 0 : i32
    %c0_i32_1 = arith.constant 0 : i32
    return %c0_i32, %c0_i32_0 : i32, i32
  }
  func.func @transform_4(%arg0: i32) -> (i32, i32) {
    %c0_i32 = arith.constant 0 : i32
    %c0_i32_0 = arith.constant 0 : i32
    return %arg0, %c0_i32 : i32, i32
  }
  func.func @transform_5(%arg0: i32) -> (i32, i32) {
    %c0_i32 = arith.constant 0 : i32
    %c0_i32_0 = arith.constant 0 : i32
    return %arg0, %c0_i32 : i32, i32
  }
}

</mosaic_0001>

<llo_original>
// kernel: tpu_custom_call.1
$region0: #{tpu_custom_call.1}
  #allocation0 [shape = 'u32[]', space=smem, size = 0x4, offset = 0x4, fixed_abs, tag = 'smem constant byte address 0x4 - core index']
  #allocation1 [shape = 'u32[72,128]{1,0:T(1,128)}', space=vmem, size = 0x9000, scoped, tag = 'internal scratch']
  %s0 = inlined_call_operand.vmem [shape: f32[16,32], index: 0, kind: input, shape index: {}]
  %s1 = inlined_call_operand.hbm [shape: bf16[32,32], index: 1, kind: input, shape index: {}]
  %s2 = inlined_call_operand.vmem [shape: f32[1,32], index: 2, kind: input, shape index: {}]
  %s3 = inlined_call_operand.vmem [shape: f32[1,32], index: 3, kind: input, shape index: {}]
  %s4 = inlined_call_operand.vmem [shape: f32[16,1], index: 4, kind: input, shape index: {}]
  %s5 = inlined_call_operand.hbm [shape: f32[16,32], index: 5, kind: output, shape index: {}]
  %s6 = sld [smem:[#allocation0]]
  $region34: #{tpu_custom_call.1} parent=0
    _
  %s8 = ssub.s32 1, %s6
  %s9 = scalar_select 0, %s8, %s6
  $region1: #{tpu_custom_call.1} parent=0
    #allocation2 [shape = 'u8[8192]{0}', space=vmem, size = 0x2000, scoped, tag = 'input window, operand 1, single buffered']
    #allocation3 [shape = 's32[1]{0}', space=sflag, size = 0x4, scoped, tag = 'scoped memory for tpu_custom_call.1']
    #allocation4 [shape = 's32[1]{0}', space=sflag, size = 0x4, scoped, tag = 'scoped memory for tpu_custom_call.1']
    #allocation5 [shape = 'u8[8192]{0}', space=vmem, size = 0x2000, scoped, tag = 'output window, operand 0, single buffered']
    %10 = vsyncpa [#allocation3], 0
    %11 = vsyncpa [#allocation4], 0
    // Predicated region
    $region2: #{tpu_custom_call.1} parent=1 // pred_check
      _
    $region3: #{tpu_custom_call.1} parent=1 // pred_check_branch
      %13 = sbr.rel (0) target = $region5
    $region4: #{tpu_custom_call.1} parent=1 // pred_region
      _
    $region5: #{tpu_custom_call.1} parent=1 // pred_fallthru
      _
    // Predicated region
    $region6: #{tpu_custom_call.1} parent=1 // pred_check
      _
    $region7: #{tpu_custom_call.1} parent=1 // pred_check_branch
      %15 = sbr.rel (0) target = $region9
    $region8: #{tpu_custom_call.1} parent=1 // pred_region
      %17 = vsyncadd [#allocation3], 0
      %s18 = sshll.u32 %s1, 4
      %s19 = int_to_ptr.hbm [resolvable:$true] %s18
      %s20 = sshll.u32 [#allocation2], 4
      %s21 = int_to_ptr.vmem [resolvable:$true] %s20
      %26 = dma.hbm_to_vmem [thread:$0]  %s19, 256, %s21, [#allocation3], 64, 64, 4
    $region9: #{tpu_custom_call.1} parent=1 // pred_fallthru
      _
    // Predicated region
    $region10: #{tpu_custom_call.1} parent=1 // pred_check
      _
    $region11: #{tpu_custom_call.1} parent=1 // pred_check_branch
      %28 = sbr.rel (0) target = $region13
    $region12: #{tpu_custom_call.1} parent=1 // pred_region
      _
    $region13: #{tpu_custom_call.1} parent=1 // pred_fallthru
      _
    // Predicated region
    $region14: #{tpu_custom_call.1} parent=1 // pred_check
      _
    $region15: #{tpu_custom_call.1} parent=1 // pred_check_branch
      %30 = sbr.rel (0) target = $region17
    $region16: #{tpu_custom_call.1} parent=1 // pred_region
      _
    $region17: #{tpu_custom_call.1} parent=1 // pred_fallthru
      _
    // Predicated region
    $region18: #{tpu_custom_call.1} parent=1 // pred_check
      _
    $region19: #{tpu_custom_call.1} parent=1 // pred_check_branch
      %32 = sbr.rel (0) target = $region21
    $region20: #{tpu_custom_call.1} parent=1 // pred_region
      _
    $region21: #{tpu_custom_call.1} parent=1 // pred_fallthru
      _
    // Predicated region
    $region22: #{tpu_custom_call.1} parent=1 // pred_check
      _
    $region23: #{tpu_custom_call.1} parent=1 // pred_check_branch
      %34 = sbr.rel (0) target = $region25
    $region24: #{tpu_custom_call.1} parent=1 // pred_region
      %36 = dma.done [#allocation3], 256
    $region25: #{tpu_custom_call.1} parent=1 // pred_fallthru
      _
    %v38 = vld [vmem:[%s0] sm:$0xff]
    %v39 = vld [vmem:[%s0 + $0x8] sm:$0xff]
    %v40 = vpack.c.bf16 %v39, %v38
    %v41 = vld [vmem:[#allocation2] sm:$0xf]
    %v42 = vld [vmem:[#allocation2 + $0x4] sm:$0xf]
    %v43 = vld [vmem:[#allocation2 + $0x8] sm:$0xf]
    %v44 = vld [vmem:[#allocation2 + $0xc] sm:$0xf]
    %v45 = vld [vmem:[%s2] sm:$0x1]
    %v47 = vperm.slane %v45, 0
    %v53 = vunpack.c.l.b16 %v41
    %v54 = vunpack.c.l.b16 %v42
    %v55 = vunpack.c.l.b16 %v43
    %v56 = vunpack.c.l.b16 %v44
    %v57 = vpack.c.b16 %v54, %v53
    %v58 = vpack.c.b16 %v56, %v55
    %vm61 = vcmask 261120
    %v63 = vsel %vm61, %v40, 0
    %65 = vmatpush.bf16.msra.mxu0 0
    %66 = vmatpush.bf16.msra.mxu0 0
    %67 = vmatpush.bf16.msra.mxu0 0
    %68 = vmatpush.bf16.msra.mxu0 0
    %69 = vmatpush.bf16.msra.mxu0 0
    %70 = vmatpush.bf16.msra.mxu0 0
    %71 = vmatpush.bf16.msra.mxu0 %v58
    %72 = vmatpush.bf16.msra.mxu0 %v57
    %73 = vmatmul.bf16.gmra.mxu0 %v63
    %v74 = vpop.f32.mrf.mxu0
    %v75 = vadd.f32 %v47, %v74
    %v76 = vpop.f32.mrf.mxu0
    %v77 = vadd.f32 %v47, %v76
    %78 = vdwg.mxu0
    %v79 = vld [vmem:[%s3] sm:$0x1]
    %v80 = vld [vmem:[%s4] sm:$0xff]
    %v81 = vld [vmem:[%s4 + $0x8] sm:$0xff]
    %v83 = vperm.slane %v79, 0
    %86 = vset.pattern.permute.xlu0 0
    %87 = vperm.xlu0 %86, %v80
    %v88 = vpop.permute.xlu0 %87
    %91 = vset.pattern.permute.xlu0 0
    %92 = vperm.xlu0 %91, %v81
    %v93 = vpop.permute.xlu0 %92
    %v95 = vmul.f32 %v83, %v88
    %v96 = vmul.f32 %v83, %v93
    %v97 = vadd.f32 %v75, %v95
    %v98 = vadd.f32 %v77, %v96
    %v99 = vmul.f32 %v75, %v75
    %v100 = vmul.f32 %v77, %v77
    %v101 = vsel %vm61, %v99, 0.0
    %102 = vadd.xlane.f32.xlu0 %v101
    %v103 = vpop.xlane.xlu0 %102
    %v104 = vsel %vm61, %v100, 0.0
    %105 = vadd.xlane.f32.xlu0 %v104
    %v106 = vpop.xlane.xlu0 %105
    %v107 = vmul.f32 %v97, %v97
    %v108 = vmul.f32 %v98, %v98
    %v109 = vsel %vm61, %v107, 0.0
    %110 = vadd.xlane.f32.xlu0 %v109
    %v111 = vpop.xlane.xlu0 %110
    %v112 = vsel %vm61, %v108, 0.0
    %113 = vadd.xlane.f32.xlu0 %v112
    %v114 = vpop.xlane.xlu0 %113
    %v115 = vrsqrt.pop %v103
    %v116 = vmul.f32 %v115, %v103
    %v117 = vmul.f32 %v116, %v115
    %v118 = vmul.f32 0.5, %v117
    %v119 = vsub.f32 1.5, %v118
    %v120 = vmul.f32 %v115, %v119
    %v121 = vmul.f32 %v103, %v120
    %vm122 = vcmp.eq.f32.partialorder %v103, inf
    %v123 = vsel %vm122, %v103, %v121
    %vm124 = vcmp.eq.f32.partialorder %v103, 0.0
    %v125 = vand.u32 %v103, 2147483648
    %v126 = vsel %vm124, %v125, %v123
    %v127 = vrsqrt.pop %v106
    %v128 = vmul.f32 %v127, %v106
    %v129 = vmul.f32 %v128, %v127
    %v130 = vmul.f32 0.5, %v129
    %v131 = vsub.f32 1.5, %v130
    %v132 = vmul.f32 %v127, %v131
    %v133 = vmul.f32 %v106, %v132
    %vm134 = vcmp.eq.f32.partialorder %v106, inf
    %v135 = vsel %vm134, %v106, %v133
    %vm136 = vcmp.eq.f32.partialorder %v106, 0.0
    %v137 = vand.u32 %v106, 2147483648
    %v138 = vsel %vm136, %v137, %v135
    %v139 = vmax.f32 %v111, 1e-30
    %v140 = vmax.f32 %v114, 1e-30
    %v141 = vrsqrt.pop %v139
    %v142 = vmul.f32 %v141, %v139
    %v143 = vmul.f32 %v142, %v141
    %v144 = vmul.f32 0.5, %v143
    %v145 = vsub.f32 1.5, %v144
    %v146 = vmul.f32 %v141, %v145
    %vm147 = vweird.f32 %v139
    %vm148 = vweird.f32 %v141
    %vm149 = vmor %vm147, %vm148
    %v150 = vsel %vm149, %v141, %v146
    %v151 = vrsqrt.pop %v140
    %v152 = vmul.f32 %v151, %v140
    %v153 = vmul.f32 %v152, %v151
    %v154 = vmul.f32 0.5, %v153
    %v155 = vsub.f32 1.5, %v154
    %v156 = vmul.f32 %v151, %v155
    %vm157 = vweird.f32 %v140
    %vm158 = vweird.f32 %v151
    %vm159 = vmor %vm157, %vm158
    %v160 = vsel %vm159, %v151, %v156
    %v161 = vmul.f32 %v126, %v150
    %v162 = vmul.f32 %v138, %v160
    %v163 = vmul.f32 %v97, %v161
    %v164 = vmul.f32 %v98, %v162
    %165 = vst.msk [vmem:[#allocation5] sm:$0xff] %vm61, %v163
    %166 = vst.msk [vmem:[#allocation5 + $0x8] sm:$0xff] %vm61, %v164
    // Predicated region
    $region26: #{tpu_custom_call.1} parent=1 // pred_check
      _
    $region27: #{tpu_custom_call.1} parent=1 // pred_check_branch
      %168 = sbr.rel (0) target = $region29
    $region28: #{tpu_custom_call.1} parent=1 // pred_region
      %170 = vsyncadd [#allocation4], 0
      %s171 = sshll.u32 [#allocation5], 4
      %s172 = int_to_ptr.vmem [resolvable:$true] %s171
      %s173 = sshll.u32 %s5, 4
      %s174 = int_to_ptr.hbm [resolvable:$true] %s173
      %179 = dma.vmem_to_hbm [thread:$0]  %s172, 256, %s174, [#allocation4], 128, 128, 8
    $region29: #{tpu_custom_call.1} parent=1 // pred_fallthru
      _
    // Predicated region
    $region30: #{tpu_custom_call.1} parent=1 // pred_check
      _
    $region31: #{tpu_custom_call.1} parent=1 // pred_check_branch
      %181 = sbr.rel (0) target = $region33
    $region32: #{tpu_custom_call.1} parent=1 // pred_region
      %183 = dma.done [#allocation4], 256
    $region33: #{tpu_custom_call.1} parent=1 // pred_fallthru
      _
    %184 = vsyncpa [#allocation3], 1
    %185 = vsyncpa [#allocation4], 1

</llo_original>
